<compile_context>
chip_gen: v5e
topology: v5e:2x2
jax: 0.10.0
libtpu: 0.0.40
codegen_flags: <defaults>
</compile_context>

<pallas_src>
import math
import functools

import jax
import jax.numpy as jnp
from jax.experimental import pallas as pl
from jax.experimental.pallas import tpu as pltpu

FEATURES = (64, 64, 128, 128, 256, 256, 512, 512)
IN_CHANNELS = 3
_TK_CANDIDATES = (1024, 768, 640, 512, 384, 256, 128)
_VMEM_LIMIT = 48 * 1024 * 1024  # explicit; leaves headroom on v7x's 64 MiB VMEM


# ------------------------------ tile selection -------------------------------
def _round_up(v, m):
    return ((v + m - 1) // m) * m


def _pick_tm(m):
    """Sublane tile for M: multiple of 16 (bf16 packing), <=512, minimizing
    (grid steps, padded rows)."""
    best = None
    for t in range(16, 513, 16):
        steps = -(-m // t)
        key = (steps, steps * t - m, t)
        if best is None or key < best:
            best = key
    return best[2]


def _pick_tk(k):
    """K tile used when pre-padding a weight (lane-dim multiple of 128)."""
    best = None
    for t in _TK_CANDIDATES:
        steps = -(-k // t)
        key = (steps, steps * t - k, t)
        if best is None or key < best:
            best = key
    return best[2]


def _tk_from_padded(kp):
    """Recover the K tile from an already-padded K dimension (static)."""
    for t in _TK_CANDIDATES:
        if kp % t == 0:
            return t
    return 128


def _pick_tn(np_, i_steps):
    """N tile: 512/256/128; keep >=2 parallel grid blocks when N allows so both
    v7x TensorCores stay busy (harmless on single-core v5e/v6e)."""
    tn = 512 if np_ % 512 == 0 else (256 if np_ % 256 == 0 else 128)
    while tn > 128 and i_steps * (np_ // tn) < 2:
        tn //= 2
    return tn


# ------------------------------- Pallas kernel -------------------------------
def _fused_matmul_kernel(x_ref, w_ref, b_ref, o_ref, acc_ref, *, activation):
    k = pl.program_id(2)

    @pl.when(k == 0)
    def _():
        acc_ref[...] = jnp.zeros_like(acc_ref)

    # bf16 x bf16 on the MXU, f32 accumulation in VMEM scratch.
    acc_ref[...] += jnp.dot(x_ref[...], w_ref[...],
                            preferred_element_type=jnp.float32)

    @pl.when(k == pl.num_programs(2) - 1)
    def _():
        y = acc_ref[...] + b_ref[...]              # bias broadcast (f32 epilogue)
        if activation == "leaky":
            y = jnp.where(y >= 0, y, 0.2 * y)      # LeakyReLU(0.2)
        elif activation == "sigmoid":
            y = 1.0 / (1.0 + jnp.exp(-y))          # exact: stays inside [0, 1]
        o_ref[...] = y.astype(o_ref.dtype)


def fused_matmul(x, wp, bp, n_out, activation="none", out_dtype=jnp.bfloat16):
    """act(x @ w + b) on the MXU.

    `wp` is the pre-padded (Kp, Np) bf16 weight and `bp` the pre-padded (1, Np)
    f32 bias (built once at init by `_prep_gemm`).  Only the activation `x` is
    padded here (M to the sublane tile, K to Kp)."""
    M, K = x.shape
    Kp, Np = wp.shape
    tk = _tk_from_padded(Kp)
    tm = _pick_tm(M)
    Mp = _round_up(M, tm)
    tn = _pick_tn(Np, Mp // tm)
    # Ensure >=2 parallel blocks when possible (v7x has 2 TensorCores).
    if (Mp // tm) * (Np // tn) < 2 and tm > 16:
        tm = max(16, _round_up(tm // 2, 16))
        Mp = _round_up(M, tm)
        tn = _pick_tn(Np, Mp // tm)

    xq = x.astype(jnp.bfloat16)
    if (Mp, Kp) != (M, K):
        xq = jnp.pad(xq, ((0, Mp - M), (0, Kp - K)))

    kernel = functools.partial(_fused_matmul_kernel, activation=activation)
    out = pl.pallas_call(
        kernel,
        out_shape=jax.ShapeDtypeStruct((Mp, Np), out_dtype),
        grid_spec=pltpu.PrefetchScalarGridSpec(
            num_scalar_prefetch=0,
            grid=(Mp // tm, Np // tn, Kp // tk),
            in_specs=[
                pl.BlockSpec((tm, tk), lambda i, j, k: (i, k)),
                pl.BlockSpec((tk, tn), lambda i, j, k: (k, j)),
                pl.BlockSpec((1, tn), lambda i, j, k: (0, j)),
            ],
            out_specs=pl.BlockSpec((tm, tn), lambda i, j, k: (i, j)),
            scratch_shapes=[pltpu.VMEM((tm, tn), jnp.float32)],
        ),
        compiler_params=pltpu.CompilerParams(
            dimension_semantics=("parallel", "parallel", "arbitrary"),
            vmem_limit_bytes=_VMEM_LIMIT),
    )(xq, wp, bp)
    if (Mp, Np) != (M, n_out):
        out = out[:M, :n_out]
    return out


# ------------------------- weight preparation (at init) ----------------------
def _prep_gemm(wmat, bias):
    """Pad a (K, N) GEMM weight / (N,) bias to tile multiples; weight -> bf16."""
    K, N = wmat.shape
    Kp = _round_up(K, _pick_tk(K))
    Np = _round_up(N, 128)
    wp = jnp.pad(wmat.astype(jnp.bfloat16), ((0, Kp - K), (0, Np - N)))
    bp = jnp.pad(bias.astype(jnp.float32).reshape(1, -1), ((0, 0), (0, Np - N)))
    return wp, bp


def prep_conv(w_oihw, b):
    """OIHW conv weight -> pre-padded (9*Cin, Cout) bf16 GEMM matrix."""
    cout, cin = int(w_oihw.shape[0]), int(w_oihw.shape[1])
    wmat = jnp.transpose(w_oihw, (2, 3, 1, 0)).reshape(9 * cin, cout)
    return _prep_gemm(wmat, b)


def prep_linear(w_out_in, b):
    return _prep_gemm(w_out_in.T, b)


# ------------------------------- model pieces --------------------------------
def conv_block(x, wp, bp, cout, stride, use_act=True):
    """ConvBlock forward: 3x3 conv (padding=1, given stride) + LeakyReLU(0.2)
    (or identity).  x is NHWC; wp/bp come from prep_conv."""
    # TODO(synk): fuse the im2col gather into the kernel (tap-axis grid /
    # strided manual DMA of the 9 shifted windows) to avoid materializing the
    # 9x-expanded patches array; at batch=2 this glue is only a few MB/layer.
    N, H, W, Cin = x.shape
    Ho = (H + 2 - 3) // stride + 1
    Wo = (W + 2 - 3) // stride + 1
    xp = jnp.pad(x, ((0, 0), (1, 1), (1, 1), (0, 0)))
    cols = []
    for kh in range(3):
        for kw in range(3):
            cols.append(xp[:, kh:kh + stride * (Ho - 1) + 1:stride,
                            kw:kw + stride * (Wo - 1) + 1:stride, :])
    patches = jnp.concatenate(cols, axis=-1).reshape(N * Ho * Wo, 9 * Cin)
    out = fused_matmul(patches, wp, bp, cout,
                       activation="leaky" if use_act else "none")
    return out.reshape(N, Ho, Wo, cout)


@functools.partial(jax.jit, static_argnames=("stride", "use_act"))
def conv_block_apply(x_nchw, w_oihw, b, stride=1, use_act=True):
    """Direct equivalent of the PyTorch ConvBlock forward (NCHW in/out, f32)."""
    wp, bp = prep_conv(w_oihw, b)
    x = jnp.transpose(x_nchw, (0, 2, 3, 1)).astype(jnp.bfloat16)
    y = conv_block(x, wp, bp, int(w_oihw.shape[0]), stride, use_act)
    return jnp.transpose(y, (0, 3, 1, 2)).astype(jnp.float32)


def adaptive_avg_pool2d(x, out_h=6, out_w=6):
    """Exact PyTorch AdaptiveAvgPool2d index semantics; x is NHWC (JAX glue)."""
    N, H, W, C = x.shape
    rows = []
    for i in range(out_h):
        h0 = (i * H) // out_h
        h1 = -((-(i + 1) * H) // out_h)
        cols = []
        for j in range(out_w):
            w0 = (j * W) // out_w
            w1 = -((-(j + 1) * W) // out_w)
            cols.append(jnp.mean(x[:, h0:h1, w0:w1, :].astype(jnp.float32),
                                 axis=(1, 2)))
        rows.append(jnp.stack(cols, axis=1))
    return jnp.stack(rows, axis=1).astype(x.dtype)  # (N, out_h, out_w, C)


def init_params(key):
    """Deterministic init mirroring nn.Conv2d / nn.Linear defaults; all weights
    returned pre-transposed / pre-padded / bf16, ready for fused_matmul."""
    convs = []
    cin = IN_CHANNELS
    keys = jax.random.split(key, len(FEATURES) + 2)
    for idx, cout in enumerate(FEATURES):
        kw_, kb_ = jax.random.split(keys[idx])
        bound = 1.0 / math.sqrt(cin * 9)
        w = jax.random.uniform(kw_, (cout, cin, 3, 3), jnp.float32, -bound, bound)
        b = jax.random.uniform(kb_, (cout,), jnp.float32, -bound, bound)
        convs.append(prep_conv(w, b))
        cin = cout

    def linear(k, fin, fout):
        k1, k2 = jax.random.split(k)
        bound = 1.0 / math.sqrt(fin)
        w = jax.random.uniform(k1, (fout, fin), jnp.float32, -bound, bound)
        b = jax.random.uniform(k2, (fout,), jnp.float32, -bound, bound)
        return prep_linear(w, b)

    return {"convs": convs,
            "fc1": linear(keys[-2], 512 * 6 * 6, 1024),
            "fc2": linear(keys[-1], 1024, 1)}


@jax.jit
def discriminator_forward(x_nchw, params):
    x = jnp.transpose(x_nchw, (0, 2, 3, 1)).astype(jnp.bfloat16)  # NCHW -> NHWC
    for idx, (wp, bp) in enumerate(params["convs"]):
        x = conv_block(x, wp, bp, FEATURES[idx], stride=1 + idx % 2, use_act=True)
    x = adaptive_avg_pool2d(x, 6, 6)
    # Flatten in PyTorch NCHW order (channels-major) to match nn.Flatten.
    x = jnp.transpose(x, (0, 3, 1, 2)).reshape(x.shape[0], -1)    # (N, 512*6*6)
    w1, b1 = params["fc1"]
    w2, b2 = params["fc2"]
    x = fused_matmul(x, w1, b1, 1024, activation="leaky")
    x = fused_matmul(x, w2, b2, 1, activation="sigmoid", out_dtype=jnp.float32)
    return x  # (N, 1), in [0, 1]


if __name__ == "__main__":
    key = jax.random.PRNGKey(0)
    pkey, xkey, ckey = jax.random.split(key, 3)

    # --- single ConvBlock (the spec module) parity check vs. pure-JAX conv ----
    kw_, kb_, kx_ = jax.random.split(ckey, 3)
    w = jax.random.uniform(kw_, (8, 4, 3, 3), jnp.float32, -0.3, 0.3)
    b = jax.random.uniform(kb_, (8,), jnp.float32, -0.3, 0.3)
    xc = jax.random.normal(kx_, (2, 4, 16, 16), jnp.float32)
    y = jax.block_until_ready(conv_block_apply(xc, w, b, stride=1, use_act=True))
    ref = jax.lax.conv_general_dilated(
        xc, w, (1, 1), ((1, 1), (1, 1)),
        dimension_numbers=("NCHW", "OIHW", "NCHW")) + b[None, :, None, None]
    ref = jnp.where(ref >= 0, ref, 0.2 * ref)
    assert y.shape == ref.shape == (2, 8, 16, 16)
    assert float(jnp.max(jnp.abs(y - ref))) < 0.2, "ConvBlock mismatch (bf16 MXU)"

    # --- full TriSRNet discriminator built from ConvBlocks ---------------------
    params = init_params(pkey)
    # batch=2, 3x48x48: spatial 48 -> 3 through the four stride-2 blocks,
    # adaptive pool maps 3x3 -> 6x6 for the 512*6*6 classifier.
    x = jax.random.normal(xkey, (2, 3, 48, 48), jnp.float32)
    out = jax.block_until_ready(discriminator_forward(x, params))
    assert out.shape == (2, 1), out.shape
    assert bool(jnp.all((out >= 0.0) & (out <= 1.0)))
    print("KERNEL_OK")
</pallas_src>

<mosaic_0001>
module attributes {stable_mosaic.version = 11 : i64} {
  func.func @_fused_matmul_kernel(%arg0: i32, %arg1: i32, %arg2: i32, %arg3: memref<256x128xbf16, #tpu.memory_space<vmem>>, %arg4: memref<128x128xbf16, #tpu.memory_space<vmem>>, %arg5: memref<1x128xf32, #tpu.memory_space<vmem>>, %arg6: memref<256x128xbf16, #tpu.memory_space<vmem>>, %arg7: memref<256x128xf32, #tpu.memory_space<vmem>>) attributes {dimension_semantics = [#tpu.dimension_semantics<parallel>, #tpu.dimension_semantics<parallel>, #tpu.dimension_semantics<arbitrary>], iteration_bounds = array<i64: 2, 1, 1>, scalar_prefetch = 0 : i64, scratch_operands = 1 : i64, tpu.core_type = #tpu.core_type<tc>, window_params = [{transform_indices = @transform_0, window_bounds = array<i64: 256, 128>}, {transform_indices = @transform_1, window_bounds = array<i64: 128, 128>}, {transform_indices = @transform_2, window_bounds = array<i64: 1, 128>}, {transform_indices = @transform_3, window_bounds = array<i64: 256, 128>}]} {
    %c0_i32 = arith.constant 0 : i32
    %0 = arith.cmpi eq, %arg2, %c0_i32 : i32
    %1 = arith.extui %0 : i1 to i32
    %c0_i32_0 = arith.constant 0 : i32
    %2 = arith.cmpi ne, %1, %c0_i32_0 : i32
    scf.if %2 {
      %cst_10 = arith.constant 0.000000e+00 : f32
      %12 = vector.broadcast %cst_10 : f32 to vector<256x128xf32>
      %c0_11 = arith.constant 0 : index
      %c0_12 = arith.constant 0 : index
      %13 = vector.load %arg7[%c0_11, %c0_12] : memref<256x128xf32, #tpu.memory_space<vmem>>, vector<256x128xf32>
      tpu.vector_store %arg7[%c0_11, %c0_12], %12 {strides = array<i32>} : memref<256x128xf32, #tpu.memory_space<vmem>>, vector<256x128xf32>,
    } else {
    }
    %c0 = arith.constant 0 : index
    %c0_1 = arith.constant 0 : index
    %3 = vector.load %arg7[%c0, %c0_1] : memref<256x128xf32, #tpu.memory_space<vmem>>, vector<256x128xf32>
    %c0_2 = arith.constant 0 : index
    %c0_3 = arith.constant 0 : index
    %4 = vector.load %arg3[%c0_2, %c0_3] : memref<256x128xbf16, #tpu.memory_space<vmem>>, vector<256x128xbf16>
    %c0_4 = arith.constant 0 : index
    %c0_5 = arith.constant 0 : index
    %5 = vector.load %arg4[%c0_4, %c0_5] : memref<128x128xbf16, #tpu.memory_space<vmem>>, vector<128x128xbf16>
    %cst = arith.constant dense<0.000000e+00> : vector<256x128xf32>
    %6 = tpu.matmul %4, %5, %cst {dimension_numbers = #tpu.dot_dimension_numbers<[1], [0], [0], [1], [0, 0, 1, 1], [], []>} : vector<256x128xbf16>, vector<128x128xbf16>, vector<256x128xf32> -> vector<256x128xf32>
    %7 = arith.addf %3, %6 : vector<256x128xf32>
    %c0_6 = arith.constant 0 : index
    %c0_7 = arith.constant 0 : index
    %8 = vector.load %arg7[%c0_6, %c0_7] : memref<256x128xf32, #tpu.memory_space<vmem>>, vector<256x128xf32>
    tpu.vector_store %arg7[%c0_6, %c0_7], %7 {strides = array<i32>} : memref<256x128xf32, #tpu.memory_space<vmem>>, vector<256x128xf32>,
    %c0_i32_8 = arith.constant 0 : i32
    %9 = arith.cmpi eq, %arg2, %c0_i32_8 : i32
    %10 = arith.extui %9 : i1 to i32
    %c0_i32_9 = arith.constant 0 : i32
    %11 = arith.cmpi ne, %10, %c0_i32_9 : i32
    scf.if %11 {
      %c0_10 = arith.constant 0 : index
      %c0_11 = arith.constant 0 : index
      %12 = vector.load %arg7[%c0_10, %c0_11] : memref<256x128xf32, #tpu.memory_space<vmem>>, vector<256x128xf32>
      %c0_12 = arith.constant 0 : index
      %c0_13 = arith.constant 0 : index
      %13 = vector.load %arg5[%c0_12, %c0_13] : memref<1x128xf32, #tpu.memory_space<vmem>>, vector<1x128xf32>
      %14 = vector.broadcast %13 : vector<1x128xf32> to vector<256x128xf32>
      %15 = arith.addf %12, %14 : vector<256x128xf32>
      %cst_14 = arith.constant 0.000000e+00 : f32
      %16 = vector.broadcast %cst_14 : f32 to vector<256x128xf32>
      %17 = arith.cmpf oge, %15, %16 : vector<256x128xf32>
      %cst_15 = arith.constant 2.000000e-01 : f32
      %18 = vector.broadcast %cst_15 : f32 to vector<256x128xf32>
      %19 = arith.mulf %18, %15 : vector<256x128xf32>
      %20 = arith.select %17, %15, %19 : vector<256x128xi1>, vector<256x128xf32>
      %21 = arith.truncf %20 : vector<256x128xf32> to vector<256x128xbf16>
      %c0_16 = arith.constant 0 : index
      %c0_17 = arith.constant 0 : index
      %22 = vector.load %arg6[%c0_16, %c0_17] : memref<256x128xbf16, #tpu.memory_space<vmem>>, vector<256x128xbf16>
      tpu.vector_store %arg6[%c0_16, %c0_17], %21 {strides = array<i32>} : memref<256x128xbf16, #tpu.memory_space<vmem>>, vector<256x128xbf16>,
    } else {
    }
    return
  }
  func.func @transform_0(%arg0: i32, %arg1: i32, %arg2: i32) -> (i32, i32) {
    %c0_i32 = arith.constant 0 : i32
    return %arg0, %arg2 : i32, i32
  }
  func.func @transform_1(%arg0: i32, %arg1: i32, %arg2: i32) -> (i32, i32) {
    %c0_i32 = arith.constant 0 : i32
    return %arg2, %arg1 : i32, i32
  }
  func.func @transform_2(%arg0: i32, %arg1: i32, %arg2: i32) -> (i32, i32) {
    %c0_i32 = arith.constant 0 : i32
    %c0_i32_0 = arith.constant 0 : i32
    return %c0_i32, %arg1 : i32, i32
  }
  func.func @transform_3(%arg0: i32, %arg1: i32, %arg2: i32) -> (i32, i32) {
    %c0_i32 = arith.constant 0 : i32
    return %arg0, %arg1 : i32, i32
  }
}

</mosaic_0001>

<llo_original>
// kernel: conv_block_apply.1
$region0: #{conv_block_apply.1}
  #allocation0 [shape = 'u32[]', space=smem, size = 0x4, offset = 0x4, fixed_abs, tag = 'smem constant byte address 0x4 - core index']
  #allocation1 [shape = 'u32[72,128]{1,0:T(1,128)}', space=vmem, size = 0x9000, scoped, tag = 'internal scratch']
  #allocation2 [shape = 'f32[256,128]{1,0:T(8,128)}', space=vmem, size = 0x20000, scoped, tag = 'scratch operand']
  %s0 = inlined_call_operand.vmem [shape: bf16[512,128], index: 0, kind: input, shape index: {}]
  %s1 = inlined_call_operand.vmem [shape: bf16[128,128], index: 1, kind: input, shape index: {}]
  %s2 = inlined_call_operand.vmem [shape: f32[1,128], index: 2, kind: input, shape index: {}]
  %s3 = inlined_call_operand.vmem [shape: bf16[512,128], index: 3, kind: output, shape index: {}]
  %s4 = sld [smem:[#allocation0]]
  $region53: #{conv_block_apply.1} parent=0
    _
  %s6 = ssub.s32 1, %s4
  %s7 = scalar_select 0, %s6, %s4
  loop: start=0, step=1, limit=4
  $region2: #{conv_block_apply.1} parent=0 // loop_pre_header
    _
  $region3: #{conv_block_apply.1} parent=0 // loop_header
    %s9 = sphi 0, %s13
    %p10 = scmp.ge.s32.totalorder %s9, 4
    %s16 = sphi 0, %s35
    %s17 = sphi 0, %s31
    %s18 = sphi 0, %s27
    %s19 = sphi 0, %s16
    %s20 = sphi 0, %s17
    %s21 = sphi 0, %s18
    %s22 = sphi 0, %s19
    %s23 = sphi 0, %s20
    %s24 = sphi 0, %s21
    %s40 = sphi 0, %s42
    %s43 = sphi 0, %s40
    %s44 = sphi 0, %s43
    %s60 = sphi 0, %s44
    %s68 = sphi 0, %s70
    %s71 = sphi 0, %s68
    %s72 = sphi 0, %s71
    %s88 = sphi 0, %s72
    %s94 = sphi 0, %s96
    %s97 = sphi 0, %s94
    %s98 = sphi 0, %s97
    %s114 = sphi 0, %s98
    %s122 = sphi 0, %s124
    %s125 = sphi 0, %s122
    %s126 = sphi 0, %s125
    %s142 = sphi 0, %s126
  $region4: #{conv_block_apply.1} parent=0 // loop_header_branch
    %12 = sbr.rel (%p10) target = $region8
  $region5: #{conv_block_apply.1} parent=0 // loop_body
    %s14 = ssub.s32 %s9, 1
    %s15 = ssub.s32 %s9, 2
    %s25 = sadd.s32 1, %s18
    %p26 = scmp.ge.s32.totalorder %s25, 1
    %s27 = scalar_select %p26, 0, %s25
    %s28 = sadd.s32 1, %s17
    %s29 = scalar_select %p26, %s28, %s17
    %p30 = scmp.ge.s32.totalorder %s29, 1
    %s31 = scalar_select %p30, 0, %s29
    %s32 = sadd.s32 1, %s16
    %s33 = scalar_select %p30, %s32, %s16
    %p34 = scmp.ge.s32.totalorder %s33, 2
    %s35 = scalar_select %p34, 0, %s33
    %s36 = ssub.s32 %s16, %s35
    %s37 = ssub.s32 %s18, %s27
    %s38 = sor.u32 %s36, %s37
    %p39 = scmp.eq.s32.totalorder %s38, 0
    %s41 = sadd.s32 %s40, 1
    %s42 = scalar_select %p39, %s40, %s41
    %p45 = pneg %p39
    %p46 = scmp.eq.s32.totalorder %s9, 1
    %p47 = por %p45, %p46
    %p48 = scmp.ne.s32.totalorder %s40, %s43
    %p49 = scmp.eq.s32.totalorder %s9, 0
    %p50 = por %p48, %p49
    %p51 = scmp.ne.s32.totalorder %s40, %s43
    %p52 = scmp.eq.s32.totalorder %s14, 1
    %p53 = por %p51, %p52
    %p54 = scmp.ne.s32.totalorder %s43, %s44
    %p55 = scmp.eq.s32.totalorder %s14, 0
    %p56 = por %p54, %p55
    %p57 = scmp.ne.s32.totalorder %s43, %s44
    %p58 = scmp.eq.s32.totalorder %s15, 1
    %p59 = por %p57, %p58
    %p61 = scmp.ne.s32.totalorder %s44, %s60
    %p62 = scmp.eq.s32.totalorder %s15, 0
    %p63 = por %p61, %p62
    %s64 = ssub.s32 %s18, %s27
    %s65 = ssub.s32 %s17, %s31
    %s66 = sor.u32 %s64, %s65
    %p67 = scmp.eq.s32.totalorder %s66, 0
    %s69 = sadd.s32 %s68, 1
    %s70 = scalar_select %p67, %s68, %s69
    %p73 = pneg %p67
    %p74 = scmp.eq.s32.totalorder %s9, 1
    %p75 = por %p73, %p74
    %p76 = scmp.ne.s32.totalorder %s68, %s71
    %p77 = scmp.eq.s32.totalorder %s9, 0
    %p78 = por %p76, %p77
    %p79 = scmp.ne.s32.totalorder %s68, %s71
    %p80 = scmp.eq.s32.totalorder %s14, 1
    %p81 = por %p79, %p80
    %p82 = scmp.ne.s32.totalorder %s71, %s72
    %p83 = scmp.eq.s32.totalorder %s14, 0
    %p84 = por %p82, %p83
    %p85 = scmp.ne.s32.totalorder %s71, %s72
    %p86 = scmp.eq.s32.totalorder %s15, 1
    %p87 = por %p85, %p86
    %p89 = scmp.ne.s32.totalorder %s72, %s88
    %p90 = scmp.eq.s32.totalorder %s15, 0
    %p91 = por %p89, %p90
    %s92 = ssub.s32 %s17, %s31
    %p93 = scmp.eq.s32.totalorder %s92, 0
    %s95 = sadd.s32 %s94, 1
    %s96 = scalar_select %p93, %s94, %s95
    %p99 = pneg %p93
    %p100 = scmp.eq.s32.totalorder %s9, 1
    %p101 = por %p99, %p100
    %p102 = scmp.ne.s32.totalorder %s94, %s97
    %p103 = scmp.eq.s32.totalorder %s9, 0
    %p104 = por %p102, %p103
    %p105 = scmp.ne.s32.totalorder %s94, %s97
    %p106 = scmp.eq.s32.totalorder %s14, 1
    %p107 = por %p105, %p106
    %p108 = scmp.ne.s32.totalorder %s97, %s98
    %p109 = scmp.eq.s32.totalorder %s14, 0
    %p110 = por %p108, %p109
    %p111 = scmp.ne.s32.totalorder %s97, %s98
    %p112 = scmp.eq.s32.totalorder %s15, 1
    %p113 = por %p111, %p112
    %p115 = scmp.ne.s32.totalorder %s98, %s114
    %p116 = scmp.eq.s32.totalorder %s15, 0
    %p117 = por %p115, %p116
    %s118 = ssub.s32 %s16, %s35
    %s119 = ssub.s32 %s17, %s31
    %s120 = sor.u32 %s118, %s119
    %p121 = scmp.eq.s32.totalorder %s120, 0
    %s123 = sadd.s32 %s122, 1
    %s124 = scalar_select %p121, %s122, %s123
    %p127 = pneg %p121
    %p128 = scmp.eq.s32.totalorder %s9, 1
    %p129 = por %p127, %p128
    %p130 = scmp.ne.s32.totalorder %s122, %s125
    %p131 = scmp.eq.s32.totalorder %s9, 0
    %p132 = por %p130, %p131
    %p133 = scmp.ne.s32.totalorder %s122, %s125
    %p134 = scmp.eq.s32.totalorder %s14, 1
    %p135 = por %p133, %p134
    %p136 = scmp.ne.s32.totalorder %s125, %s126
    %p137 = scmp.eq.s32.totalorder %s14, 0
    %p138 = por %p136, %p137
    %p139 = scmp.ne.s32.totalorder %s125, %s126
    %p140 = scmp.eq.s32.totalorder %s15, 1
    %p141 = por %p139, %p140
    %p143 = scmp.ne.s32.totalorder %s126, %s142
    %p144 = scmp.eq.s32.totalorder %s15, 0
    %p145 = por %p143, %p144
    %p146 = scmp.le.s32.totalorder 1, %s9
    %p147 = scmp.lt.s32.totalorder %s9, 3
    %p148 = pnand %p146, %p147
    %p149 = pneg %p148
    // Predicated region
    $region9: #{conv_block_apply.1} parent=5 // pred_check
      _
    $region10: #{conv_block_apply.1} parent=5 // pred_check_branch
      %151 = sbr.rel (%p148) target = $region12
    $region11: #{conv_block_apply.1} parent=5 // pred_region
      %s152 = ssub.s32 %s9, 1
      // Predicated region
      $region13: #{conv_block_apply.1} parent=11 // pred_check
        %p153 = pneg %p84
      $region14: #{conv_block_apply.1} parent=11 // pred_check_branch
        %155 = sbr.rel (%p153) target = $region16
      $region15: #{conv_block_apply.1} parent=11 // pred_region
        %s156 = smul.u32 16, %s21
        %p157 = scmp.lt.s32.totalorder %s156, 15
        %s158 = scalar_select %p157, %s156, 15
        %p159 = scmp.lt.s32.totalorder %s20, 0
        %s160 = scalar_select %p159, %s20, 0
        %s161 = sadd.s32 %s160, %s158
        %s162 = smul.addr %s161, 4
        %s163 = scalar_lea.vmem %s1, %s162
        %s164 = smul.u32 16, %s21
      $region16: #{conv_block_apply.1} parent=11 // pred_fallthru
        _
      // Predicated region
      $region17: #{conv_block_apply.1} parent=11 // pred_check
        %p165 = pneg %p110
      $region18: #{conv_block_apply.1} parent=11 // pred_check_branch
        %167 = sbr.rel (%p165) target = $region20
      $region19: #{conv_block_apply.1} parent=11 // pred_region
        %p168 = scmp.lt.s32.totalorder %s20, 0
        %s169 = scalar_select %p168, %s20, 0
        %s170 = scalar_lea.vmem %s2, %s169
      $region20: #{conv_block_apply.1} parent=11 // pred_fallthru
        _
    $region12: #{conv_block_apply.1} parent=5 // pred_fallthru
      _
    %p171 = scmp.lt.s32.totalorder %s9, 2
    // Predicated region
    $region21: #{conv_block_apply.1} parent=5 // pred_check
      %p172 = pneg %p171
    $region22: #{conv_block_apply.1} parent=5 // pred_check_branch
      %174 = sbr.rel (%p172) target = $region24
    $region23: #{conv_block_apply.1} parent=5 // pred_region
      // Predicated region
      $region25: #{conv_block_apply.1} parent=23 // pred_check
        %p175 = pneg %p50
      $region26: #{conv_block_apply.1} parent=23 // pred_check_branch
        %177 = sbr.rel (%p175) target = $region28
      $region27: #{conv_block_apply.1} parent=23 // pred_region
        %s178 = smul.u32 32, %s16
        %p179 = scmp.lt.s32.totalorder %s178, 63
        %s180 = scalar_select %p179, %s178, 63
        %p181 = scmp.lt.s32.totalorder %s18, 0
        %s182 = scalar_select %p181, %s18, 0
        %s183 = sadd.s32 %s182, %s180
        %s184 = smul.addr %s183, 4
        %s185 = scalar_lea.vmem %s0, %s184
        %s186 = smul.u32 32, %s16
      $region28: #{conv_block_apply.1} parent=23 // pred_fallthru
        _
    $region24: #{conv_block_apply.1} parent=5 // pred_fallthru
      _
    %p187 = scmp.le.s32.totalorder 1, %s9
    %p188 = scmp.lt.s32.totalorder %s9, 3
    %p189 = pnand %p187, %p188
    %p190 = pneg %p189
    // Predicated region
    $region29: #{conv_block_apply.1} parent=5 // pred_check
      _
    $region30: #{conv_block_apply.1} parent=5 // pred_check_branch
      %192 = sbr.rel (%p189) target = $region32
    $region31: #{conv_block_apply.1} parent=5 // pred_region
      %s193 = ssub.s32 %s9, 1
      %s194 = smul.u32 32, %s19
      %p195 = scmp.lt.s32.totalorder %s194, 63
      %s196 = scalar_select %p195, %s194, 63
      %p197 = scmp.lt.s32.totalorder %s21, 0
      %s198 = scalar_select %p197, %s21, 0
      %s199 = sadd.s32 %s198, %s196
      %s200 = smul.addr %s199, 4
      %s201 = scalar_lea.vmem %s0, %s200
      %p202 = pneg %p56
      %p203 = pneg %p53
      %s204 = smul.u32 16, %s21
      %p205 = scmp.lt.s32.totalorder %s204, 15
      %s206 = scalar_select %p205, %s204, 15
      %p207 = scmp.lt.s32.totalorder %s20, 0
      %s208 = scalar_select %p207, %s20, 0
      %s209 = sadd.s32 %s208, %s206
      %s210 = smul.addr %s209, 4
      %s211 = scalar_lea.vmem %s1, %s210
      %p212 = pneg %p84
      %p213 = pneg %p81
      %p214 = scmp.lt.s32.totalorder %s20, 0
      %s215 = scalar_select %p214, %s20, 0
      %s216 = scalar_lea.vmem %s2, %s215
      %p217 = pneg %p110
      %p218 = pneg %p107
      %p219 = pneg %p138
      %p220 = pneg %p135
      %s221 = smul.u32 32, %s19
      %p222 = scmp.lt.s32.totalorder %s221, 63
      %s223 = scalar_select %p222, %s221, 63
      %p224 = scmp.lt.s32.totalorder %s20, 0
      %s225 = scalar_select %p224, %s20, 0
      %s226 = sadd.s32 %s225, %s223
      %s227 = smul.addr %s226, 4
      %s228 = scalar_lea.vmem %s3, %s227
      %s229 = smul.u32 32, %s19
      %p230 = scmp.lt.s32.totalorder %s229, 63
      %s231 = scalar_select %p230, %s229, 63
      %p232 = scmp.lt.s32.totalorder %s21, 0
      %s233 = scalar_select %p232, %s21, 0
      %s234 = sadd.s32 %s233, %s231
      %s235 = smul.addr %s234, 4
      %s236 = scalar_lea.vmem %s0, %s235
      %s237 = smul.u32 32, %s19
      %s238 = smul.u32 16, %s21
      %p239 = scmp.lt.s32.totalorder %s238, 15
      %s240 = scalar_select %p239, %s238, 15
      %p241 = scmp.lt.s32.totalorder %s20, 0
      %s242 = scalar_select %p241, %s20, 0
      %s243 = sadd.s32 %s242, %s240
      %s244 = smul.addr %s243, 4
      %s245 = scalar_lea.vmem %s1, %s244
      %s246 = smul.u32 16, %s21
      %p247 = scmp.lt.s32.totalorder %s20, 0
      %s248 = scalar_select %p247, %s20, 0
      %s249 = scalar_lea.vmem %s2, %s248
      %s250 = smul.u32 32, %s19
      %p251 = scmp.lt.s32.totalorder %s250, 63
      %s252 = scalar_select %p251, %s250, 63
      %p253 = scmp.lt.s32.totalorder %s20, 0
      %s254 = scalar_select %p253, %s20, 0
      %s255 = sadd.s32 %s254, %s252
      %s256 = smul.addr %s255, 4
      %s257 = scalar_lea.vmem %s3, %s256
      %s258 = smul.u32 32, %s19
      %p259 = scmp.eq.s32.totalorder %s21, 0
      // Predicated region
      $region33: #{conv_block_apply.1} parent=31 // pred_check
        %p260 = pneg %p259
      $region34: #{conv_block_apply.1} parent=31 // pred_check_branch
        %262 = sbr.rel (%p260) target = $region36
      $region35: #{conv_block_apply.1} parent=31 // pred_region
        %263 = vst [vmem:[#allocation2] sm:$0xff] 0.0
        %264 = vst [vmem:[#allocation2 + $0x8] sm:$0xff] 0.0
        %265 = vst [vmem:[#allocation2 + $0x10] sm:$0xff] 0.0
        %266 = vst [vmem:[#allocation2 + $0x18] sm:$0xff] 0.0
        %267 = vst [vmem:[#allocation2 + $0x20] sm:$0xff] 0.0
        %268 = vst [vmem:[#allocation2 + $0x28] sm:$0xff] 0.0
        %269 = vst [vmem:[#allocation2 + $0x30] sm:$0xff] 0.0
        %270 = vst [vmem:[#allocation2 + $0x38] sm:$0xff] 0.0
        %271 = vst [vmem:[#allocation2 + $0x40] sm:$0xff] 0.0
        %272 = vst [vmem:[#allocation2 + $0x48] sm:$0xff] 0.0
        %273 = vst [vmem:[#allocation2 + $0x50] sm:$0xff] 0.0
        %274 = vst [vmem:[#allocation2 + $0x58] sm:$0xff] 0.0
        %275 = vst [vmem:[#allocation2 + $0x60] sm:$0xff] 0.0
        %276 = vst [vmem:[#allocation2 + $0x68] sm:$0xff] 0.0
        %277 = vst [vmem:[#allocation2 + $0x70] sm:$0xff] 0.0
        %278 = vst [vmem:[#allocation2 + $0x78] sm:$0xff] 0.0
        %279 = vst [vmem:[#allocation2 + $0x80] sm:$0xff] 0.0
        %280 = vst [vmem:[#allocation2 + $0x88] sm:$0xff] 0.0
        %281 = vst [vmem:[#allocation2 + $0x90] sm:$0xff] 0.0
        %282 = vst [vmem:[#allocation2 + $0x98] sm:$0xff] 0.0
        %283 = vst [vmem:[#allocation2 + $0xa0] sm:$0xff] 0.0
        %284 = vst [vmem:[#allocation2 + $0xa8] sm:$0xff] 0.0
        %285 = vst [vmem:[#allocation2 + $0xb0] sm:$0xff] 0.0
        %286 = vst [vmem:[#allocation2 + $0xb8] sm:$0xff] 0.0
        %287 = vst [vmem:[#allocation2 + $0xc0] sm:$0xff] 0.0
        %288 = vst [vmem:[#allocation2 + $0xc8] sm:$0xff] 0.0
        %289 = vst [vmem:[#allocation2 + $0xd0] sm:$0xff] 0.0
        %290 = vst [vmem:[#allocation2 + $0xd8] sm:$0xff] 0.0
        %291 = vst [vmem:[#allocation2 + $0xe0] sm:$0xff] 0.0
        %292 = vst [vmem:[#allocation2 + $0xe8] sm:$0xff] 0.0
        %293 = vst [vmem:[#allocation2 + $0xf0] sm:$0xff] 0.0
        %294 = vst [vmem:[#allocation2 + $0xf8] sm:$0xff] 0.0
      $region36: #{conv_block_apply.1} parent=31 // pred_fallthru
        _
      %v295 = vld [vmem:[#allocation2] sm:$0xff]
      %v296 = vld [vmem:[#allocation2 + $0x8] sm:$0xff]
      %v297 = vld [vmem:[#allocation2 + $0x10] sm:$0xff]
      %v298 = vld [vmem:[#allocation2 + $0x18] sm:$0xff]
      %v299 = vld [vmem:[#allocation2 + $0x20] sm:$0xff]
      %v300 = vld [vmem:[#allocation2 + $0x28] sm:$0xff]
      %v301 = vld [vmem:[#allocation2 + $0x30] sm:$0xff]
      %v302 = vld [vmem:[#allocation2 + $0x38] sm:$0xff]
      %v303 = vld [vmem:[#allocation2 + $0x40] sm:$0xff]
      %v304 = vld [vmem:[#allocation2 + $0x48] sm:$0xff]
      %v305 = vld [vmem:[#allocation2 + $0x50] sm:$0xff]
      %v306 = vld [vmem:[#allocation2 + $0x58] sm:$0xff]
      %v307 = vld [vmem:[#allocation2 + $0x60] sm:$0xff]
      %v308 = vld [vmem:[#allocation2 + $0x68] sm:$0xff]
      %v309 = vld [vmem:[#allocation2 + $0x70] sm:$0xff]
      %v310 = vld [vmem:[#allocation2 + $0x78] sm:$0xff]
      %v311 = vld [vmem:[#allocation2 + $0x80] sm:$0xff]
      %v312 = vld [vmem:[#allocation2 + $0x88] sm:$0xff]
      %v313 = vld [vmem:[#allocation2 + $0x90] sm:$0xff]
      %v314 = vld [vmem:[#allocation2 + $0x98] sm:$0xff]
      %v315 = vld [vmem:[#allocation2 + $0xa0] sm:$0xff]
      %v316 = vld [vmem:[#allocation2 + $0xa8] sm:$0xff]
      %v317 = vld [vmem:[#allocation2 + $0xb0] sm:$0xff]
      %v318 = vld [vmem:[#allocation2 + $0xb8] sm:$0xff]
      %v319 = vld [vmem:[#allocation2 + $0xc0] sm:$0xff]
      %v320 = vld [vmem:[#allocation2 + $0xc8] sm:$0xff]
      %v321 = vld [vmem:[#allocation2 + $0xd0] sm:$0xff]
      %v322 = vld [vmem:[#allocation2 + $0xd8] sm:$0xff]
      %v323 = vld [vmem:[#allocation2 + $0xe0] sm:$0xff]
      %v324 = vld [vmem:[#allocation2 + $0xe8] sm:$0xff]
      %v325 = vld [vmem:[#allocation2 + $0xf0] sm:$0xff]
      %v326 = vld [vmem:[#allocation2 + $0xf8] sm:$0xff]
      %v327 = vld [vmem:[%s236] sm:$0xf]
      %v328 = vld [vmem:[%s236 + $0x4] sm:$0xf]
      %v329 = vld [vmem:[%s236 + $0x8] sm:$0xf]
      %v330 = vld [vmem:[%s236 + $0xc] sm:$0xf]
      %v331 = vld [vmem:[%s236 + $0x10] sm:$0xf]
      %v332 = vld [vmem:[%s236 + $0x14] sm:$0xf]
      %v333 = vld [vmem:[%s236 + $0x18] sm:$0xf]
      %v334 = vld [vmem:[%s236 + $0x1c] sm:$0xf]
      %v335 = vld [vmem:[%s236 + $0x20] sm:$0xf]
      %v336 = vld [vmem:[%s236 + $0x24] sm:$0xf]
      %v337 = vld [vmem:[%s236 + $0x28] sm:$0xf]
      %v338 = vld [vmem:[%s236 + $0x2c] sm:$0xf]
      %v339 = vld [vmem:[%s236 + $0x30] sm:$0xf]
      %v340 = vld [vmem:[%s236 + $0x34] sm:$0xf]
      %v341 = vld [vmem:[%s236 + $0x38] sm:$0xf]
      %v342 = vld [vmem:[%s236 + $0x3c] sm:$0xf]
      %v343 = vld [vmem:[%s236 + $0x40] sm:$0xf]
      %v344 = vld [vmem:[%s236 + $0x44] sm:$0xf]
      %v345 = vld [vmem:[%s236 + $0x48] sm:$0xf]
      %v346 = vld [vmem:[%s236 + $0x4c] sm:$0xf]
      %v347 = vld [vmem:[%s236 + $0x50] sm:$0xf]
      %v348 = vld [vmem:[%s236 + $0x54] sm:$0xf]
      %v349 = vld [vmem:[%s236 + $0x58] sm:$0xf]
      %v350 = vld [vmem:[%s236 + $0x5c] sm:$0xf]
      %v351 = vld [vmem:[%s236 + $0x60] sm:$0xf]
      %v352 = vld [vmem:[%s236 + $0x64] sm:$0xf]
      %v353 = vld [vmem:[%s236 + $0x68] sm:$0xf]
      %v354 = vld [vmem:[%s236 + $0x6c] sm:$0xf]
      %v355 = vld [vmem:[%s236 + $0x70] sm:$0xf]
      %v356 = vld [vmem:[%s236 + $0x74] sm:$0xf]
      %v357 = vld [vmem:[%s236 + $0x78] sm:$0xf]
      %v358 = vld [vmem:[%s236 + $0x7c] sm:$0xf]
      %v359 = vld [vmem:[%s245] sm:$0xf]
      %v360 = vld [vmem:[%s245 + $0x4] sm:$0xf]
      %v361 = vld [vmem:[%s245 + $0x8] sm:$0xf]
      %v362 = vld [vmem:[%s245 + $0xc] sm:$0xf]
      %v363 = vld [vmem:[%s245 + $0x10] sm:$0xf]
      %v364 = vld [vmem:[%s245 + $0x14] sm:$0xf]
      %v365 = vld [vmem:[%s245 + $0x18] sm:$0xf]
      %v366 = vld [vmem:[%s245 + $0x1c] sm:$0xf]
      %v367 = vld [vmem:[%s245 + $0x20] sm:$0xf]
      %v368 = vld [vmem:[%s245 + $0x24] sm:$0xf]
      %v369 = vld [vmem:[%s245 + $0x28] sm:$0xf]
      %v370 = vld [vmem:[%s245 + $0x2c] sm:$0xf]
      %v371 = vld [vmem:[%s245 + $0x30] sm:$0xf]
      %v372 = vld [vmem:[%s245 + $0x34] sm:$0xf]
      %v373 = vld [vmem:[%s245 + $0x38] sm:$0xf]
      %v374 = vld [vmem:[%s245 + $0x3c] sm:$0xf]
      %v407 = vunpack.c.l.b16 %v327
      %v408 = vunpack.c.l.b16 %v328
      %v409 = vunpack.c.l.b16 %v329
      %v410 = vunpack.c.l.b16 %v330
      %v411 = vunpack.c.l.b16 %v331
      %v412 = vunpack.c.l.b16 %v332
      %v413 = vunpack.c.l.b16 %v333
      %v414 = vunpack.c.l.b16 %v334
      %v415 = vunpack.c.l.b16 %v335
      %v416 = vunpack.c.l.b16 %v336
      %v417 = vunpack.c.l.b16 %v337
      %v418 = vunpack.c.l.b16 %v338
      %v419 = vunpack.c.l.b16 %v339
      %v420 = vunpack.c.l.b16 %v340
      %v421 = vunpack.c.l.b16 %v341
      %v422 = vunpack.c.l.b16 %v342
      %v423 = vunpack.c.l.b16 %v343
      %v424 = vunpack.c.l.b16 %v344
      %v425 = vunpack.c.l.b16 %v345
      %v426 = vunpack.c.l.b16 %v346
      %v427 = vunpack.c.l.b16 %v347
      %v428 = vunpack.c.l.b16 %v348
      %v429 = vunpack.c.l.b16 %v349
      %v430 = vunpack.c.l.b16 %v350
      %v431 = vunpack.c.l.b16 %v351
      %v432 = vunpack.c.l.b16 %v352
      %v433 = vunpack.c.l.b16 %v353
      %v434 = vunpack.c.l.b16 %v354
      %v435 = vunpack.c.l.b16 %v355
      %v436 = vunpack.c.l.b16 %v356
      %v437 = vunpack.c.l.b16 %v357
      %v438 = vunpack.c.l.b16 %v358
      %v439 = vpack.c.b16 %v408, %v407
      %v440 = vpack.c.b16 %v410, %v409
      %v441 = vpack.c.b16 %v412, %v411
      %v442 = vpack.c.b16 %v414, %v413
      %v443 = vpack.c.b16 %v416, %v415
      %v444 = vpack.c.b16 %v418, %v417
      %v445 = vpack.c.b16 %v420, %v419
      %v446 = vpack.c.b16 %v422, %v421
      %v447 = vpack.c.b16 %v424, %v423
      %v448 = vpack.c.b16 %v426, %v425
      %v449 = vpack.c.b16 %v428, %v427
      %v450 = vpack.c.b16 %v430, %v429
      %v451 = vpack.c.b16 %v432, %v431
      %v452 = vpack.c.b16 %v434, %v433
      %v453 = vpack.c.b16 %v436, %v435
      %v454 = vpack.c.b16 %v438, %v437
      %v487 = vunpack.c.l.b16 %v359
      %v488 = vunpack.c.l.b16 %v360
      %v489 = vunpack.c.l.b16 %v361
      %v490 = vunpack.c.l.b16 %v362
      %v491 = vunpack.c.l.b16 %v363
      %v492 = vunpack.c.l.b16 %v364
      %v493 = vunpack.c.l.b16 %v365
      %v494 = vunpack.c.l.b16 %v366
      %v495 = vunpack.c.l.b16 %v367
      %v496 = vunpack.c.l.b16 %v368
      %v497 = vunpack.c.l.b16 %v369
      %v498 = vunpack.c.l.b16 %v370
      %v499 = vunpack.c.l.b16 %v371
      %v500 = vunpack.c.l.b16 %v372
      %v501 = vunpack.c.l.b16 %v373
      %v502 = vunpack.c.l.b16 %v374
      %v503 = vpack.c.b16 %v488, %v487
      %v504 = vpack.c.b16 %v490, %v489
      %v505 = vpack.c.b16 %v492, %v491
      %v506 = vpack.c.b16 %v494, %v493
      %v507 = vpack.c.b16 %v496, %v495
      %v508 = vpack.c.b16 %v498, %v497
      %v509 = vpack.c.b16 %v500, %v499
      %v510 = vpack.c.b16 %v502, %v501
      %519 = vmatpush.bf16.msra.mxu0 %v510
      %520 = vmatpush.bf16.msra.mxu0 %v509
      %521 = vmatpush.bf16.msra.mxu0 %v508
      %522 = vmatpush.bf16.msra.mxu0 %v507
      %523 = vmatpush.bf16.msra.mxu0 %v506
      %524 = vmatpush.bf16.msra.mxu0 %v505
      %525 = vmatpush.bf16.msra.mxu0 %v504
      %526 = vmatpush.bf16.msra.mxu0 %v503
      %527 = vmatmul.bf16.gmra.mxu0 %v439
      %v528 = vpop.f32.mrf.mxu0
      %v529 = vadd.f32 0.0, %v528
      %v530 = vpop.f32.mrf.mxu0
      %v531 = vadd.f32 0.0, %v530
      %532 = vmatmul.bf16.gmra.mxu0 %v440
      %v533 = vpop.f32.mrf.mxu0
      %v534 = vadd.f32 0.0, %v533
      %v535 = vpop.f32.mrf.mxu0
      %v536 = vadd.f32 0.0, %v535
      %537 = vmatmul.bf16.gmra.mxu0 %v441
      %v538 = vpop.f32.mrf.mxu0
      %v539 = vadd.f32 0.0, %v538
      %v540 = vpop.f32.mrf.mxu0
      %v541 = vadd.f32 0.0, %v540
      %542 = vmatmul.bf16.gmra.mxu0 %v442
      %v543 = vpop.f32.mrf.mxu0
      %v544 = vadd.f32 0.0, %v543
      %v545 = vpop.f32.mrf.mxu0
      %v546 = vadd.f32 0.0, %v545
      %547 = vmatmul.bf16.gmra.mxu0 %v443
      %v548 = vpop.f32.mrf.mxu0
      %v549 = vadd.f32 0.0, %v548
      %v550 = vpop.f32.mrf.mxu0
      %v551 = vadd.f32 0.0, %v550
      %552 = vmatmul.bf16.gmra.mxu0 %v444
      %v553 = vpop.f32.mrf.mxu0
      %v554 = vadd.f32 0.0, %v553
      %v555 = vpop.f32.mrf.mxu0
      %v556 = vadd.f32 0.0, %v555
      %557 = vmatmul.bf16.gmra.mxu0 %v445
      %v558 = vpop.f32.mrf.mxu0
      %v559 = vadd.f32 0.0, %v558
      %v560 = vpop.f32.mrf.mxu0
      %v561 = vadd.f32 0.0, %v560
      %562 = vmatmul.bf16.gmra.mxu0 %v446
      %v563 = vpop.f32.mrf.mxu0
      %v564 = vadd.f32 0.0, %v563
      %v565 = vpop.f32.mrf.mxu0
      %v566 = vadd.f32 0.0, %v565
      %567 = vmatmul.bf16.gmra.mxu0 %v447
      %v568 = vpop.f32.mrf.mxu0
      %v569 = vadd.f32 0.0, %v568
      %v570 = vpop.f32.mrf.mxu0
      %v571 = vadd.f32 0.0, %v570
      %572 = vmatmul.bf16.gmra.mxu0 %v448
      %v573 = vpop.f32.mrf.mxu0
      %v574 = vadd.f32 0.0, %v573
      %v575 = vpop.f32.mrf.mxu0
      %v576 = vadd.f32 0.0, %v575
      %577 = vmatmul.bf16.gmra.mxu0 %v449
      %v578 = vpop.f32.mrf.mxu0
      %v579 = vadd.f32 0.0, %v578
      %v580 = vpop.f32.mrf.mxu0
      %v581 = vadd.f32 0.0, %v580
      %582 = vmatmul.bf16.gmra.mxu0 %v450
      %v583 = vpop.f32.mrf.mxu0
      %v584 = vadd.f32 0.0, %v583
      %v585 = vpop.f32.mrf.mxu0
      %v586 = vadd.f32 0.0, %v585
      %587 = vmatmul.bf16.gmra.mxu0 %v451
      %v588 = vpop.f32.mrf.mxu0
      %v589 = vadd.f32 0.0, %v588
      %v590 = vpop.f32.mrf.mxu0
      %v591 = vadd.f32 0.0, %v590
      %592 = vmatmul.bf16.gmra.mxu0 %v452
      %v593 = vpop.f32.mrf.mxu0
      %v594 = vadd.f32 0.0, %v593
      %v595 = vpop.f32.mrf.mxu0
      %v596 = vadd.f32 0.0, %v595
      %597 = vmatmul.bf16.gmra.mxu0 %v453
      %v598 = vpop.f32.mrf.mxu0
      %v599 = vadd.f32 0.0, %v598
      %v600 = vpop.f32.mrf.mxu0
      %v601 = vadd.f32 0.0, %v600
      %602 = vmatmul.bf16.gmra.mxu0 %v454
      %v603 = vpop.f32.mrf.mxu0
      %v604 = vadd.f32 0.0, %v603
      %v605 = vpop.f32.mrf.mxu0
      %v606 = vadd.f32 0.0, %v605
      %607 = vdwg.mxu0
      %v608 = vadd.f32 %v295, %v529
      %v609 = vadd.f32 %v296, %v531
      %v610 = vadd.f32 %v297, %v534
      %v611 = vadd.f32 %v298, %v536
      %v612 = vadd.f32 %v299, %v539
      %v613 = vadd.f32 %v300, %v541
      %v614 = vadd.f32 %v301, %v544
      %v615 = vadd.f32 %v302, %v546
      %v616 = vadd.f32 %v303, %v549
      %v617 = vadd.f32 %v304, %v551
      %v618 = vadd.f32 %v305, %v554
      %v619 = vadd.f32 %v306, %v556
      %v620 = vadd.f32 %v307, %v559
      %v621 = vadd.f32 %v308, %v561
      %v622 = vadd.f32 %v309, %v564
      %v623 = vadd.f32 %v310, %v566
      %v624 = vadd.f32 %v311, %v569
      %v625 = vadd.f32 %v312, %v571
      %v626 = vadd.f32 %v313, %v574
      %v627 = vadd.f32 %v314, %v576
      %v628 = vadd.f32 %v315, %v579
      %v629 = vadd.f32 %v316, %v581
      %v630 = vadd.f32 %v317, %v584
      %v631 = vadd.f32 %v318, %v586
      %v632 = vadd.f32 %v319, %v589
      %v633 = vadd.f32 %v320, %v591
      %v634 = vadd.f32 %v321, %v594
      %v635 = vadd.f32 %v322, %v596
      %v636 = vadd.f32 %v323, %v599
      %v637 = vadd.f32 %v324, %v601
      %v638 = vadd.f32 %v325, %v604
      %v639 = vadd.f32 %v326, %v606
      %640 = vst [vmem:[#allocation2] sm:$0xff] %v608
      %641 = vst [vmem:[#allocation2 + $0x8] sm:$0xff] %v609
      %642 = vst [vmem:[#allocation2 + $0x10] sm:$0xff] %v610
      %643 = vst [vmem:[#allocation2 + $0x18] sm:$0xff] %v611
      %644 = vst [vmem:[#allocation2 + $0x20] sm:$0xff] %v612
      %645 = vst [vmem:[#allocation2 + $0x28] sm:$0xff] %v613
      %646 = vst [vmem:[#allocation2 + $0x30] sm:$0xff] %v614
      %647 = vst [vmem:[#allocation2 + $0x38] sm:$0xff] %v615
      %648 = vst [vmem:[#allocation2 + $0x40] sm:$0xff] %v616
      %649 = vst [vmem:[#allocation2 + $0x48] sm:$0xff] %v617
      %650 = vst [vmem:[#allocation2 + $0x50] sm:$0xff] %v618
      %651 = vst [vmem:[#allocation2 + $0x58] sm:$0xff] %v619
      %652 = vst [vmem:[#allocation2 + $0x60] sm:$0xff] %v620
      %653 = vst [vmem:[#allocation2 + $0x68] sm:$0xff] %v621
      %654 = vst [vmem:[#allocation2 + $0x70] sm:$0xff] %v622
      %655 = vst [vmem:[#allocation2 + $0x78] sm:$0xff] %v623
      %656 = vst [vmem:[#allocation2 + $0x80] sm:$0xff] %v624
      %657 = vst [vmem:[#allocation2 + $0x88] sm:$0xff] %v625
      %658 = vst [vmem:[#allocation2 + $0x90] sm:$0xff] %v626
      %659 = vst [vmem:[#allocation2 + $0x98] sm:$0xff] %v627
      %660 = vst [vmem:[#allocation2 + $0xa0] sm:$0xff] %v628
      %661 = vst [vmem:[#allocation2 + $0xa8] sm:$0xff] %v629
      %662 = vst [vmem:[#allocation2 + $0xb0] sm:$0xff] %v630
      %663 = vst [vmem:[#allocation2 + $0xb8] sm:$0xff] %v631
      %664 = vst [vmem:[#allocation2 + $0xc0] sm:$0xff] %v632
      %665 = vst [vmem:[#allocation2 + $0xc8] sm:$0xff] %v633
      %666 = vst [vmem:[#allocation2 + $0xd0] sm:$0xff] %v634
      %667 = vst [vmem:[#allocation2 + $0xd8] sm:$0xff] %v635
      %668 = vst [vmem:[#allocation2 + $0xe0] sm:$0xff] %v636
      %669 = vst [vmem:[#allocation2 + $0xe8] sm:$0xff] %v637
      %670 = vst [vmem:[#allocation2 + $0xf0] sm:$0xff] %v638
      %671 = vst [vmem:[#allocation2 + $0xf8] sm:$0xff] %v639
      // Predicated region
      $region37: #{conv_block_apply.1} parent=31 // pred_check
        %p672 = pneg %p259
      $region38: #{conv_block_apply.1} parent=31 // pred_check_branch
        %674 = sbr.rel (%p672) target = $region40
      $region39: #{conv_block_apply.1} parent=31 // pred_region
        %v675 = vld [vmem:[#allocation2] sm:$0xff]
        %v676 = vld [vmem:[#allocation2 + $0x8] sm:$0xff]
        %v677 = vld [vmem:[#allocation2 + $0x10] sm:$0xff]
        %v678 = vld [vmem:[#allocation2 + $0x18] sm:$0xff]
        %v679 = vld [vmem:[#allocation2 + $0x20] sm:$0xff]
        %v680 = vld [vmem:[#allocation2 + $0x28] sm:$0xff]
        %v681 = vld [vmem:[#allocation2 + $0x30] sm:$0xff]
        %v682 = vld [vmem:[#allocation2 + $0x38] sm:$0xff]
        %v683 = vld [vmem:[#allocation2 + $0x40] sm:$0xff]
        %v684 = vld [vmem:[#allocation2 + $0x48] sm:$0xff]
        %v685 = vld [vmem:[#allocation2 + $0x50] sm:$0xff]
        %v686 = vld [vmem:[#allocation2 + $0x58] sm:$0xff]
        %v687 = vld [vmem:[#allocation2 + $0x60] sm:$0xff]
        %v688 = vld [vmem:[#allocation2 + $0x68] sm:$0xff]
        %v689 = vld [vmem:[#allocation2 + $0x70] sm:$0xff]
        %v690 = vld [vmem:[#allocation2 + $0x78] sm:$0xff]
        %v691 = vld [vmem:[#allocation2 + $0x80] sm:$0xff]
        %v692 = vld [vmem:[#allocation2 + $0x88] sm:$0xff]
        %v693 = vld [vmem:[#allocation2 + $0x90] sm:$0xff]
        %v694 = vld [vmem:[#allocation2 + $0x98] sm:$0xff]
        %v695 = vld [vmem:[#allocation2 + $0xa0] sm:$0xff]
        %v696 = vld [vmem:[#allocation2 + $0xa8] sm:$0xff]
        %v697 = vld [vmem:[#allocation2 + $0xb0] sm:$0xff]
        %v698 = vld [vmem:[#allocation2 + $0xb8] sm:$0xff]
        %v699 = vld [vmem:[#allocation2 + $0xc0] sm:$0xff]
        %v700 = vld [vmem:[#allocation2 + $0xc8] sm:$0xff]
        %v701 = vld [vmem:[#allocation2 + $0xd0] sm:$0xff]
        %v702 = vld [vmem:[#allocation2 + $0xd8] sm:$0xff]
        %v703 = vld [vmem:[#allocation2 + $0xe0] sm:$0xff]
        %v704 = vld [vmem:[#allocation2 + $0xe8] sm:$0xff]
        %v705 = vld [vmem:[#allocation2 + $0xf0] sm:$0xff]
        %v706 = vld [vmem:[#allocation2 + $0xf8] sm:$0xff]
        %v707 = vld [vmem:[%s249] sm:$0x1]
        %v709 = vperm.slane %v707, 0
        %v711 = vadd.f32 %v675, %v709
        %v712 = vadd.f32 %v676, %v709
        %v713 = vadd.f32 %v677, %v709
        %v714 = vadd.f32 %v678, %v709
        %v715 = vadd.f32 %v679, %v709
        %v716 = vadd.f32 %v680, %v709
        %v717 = vadd.f32 %v681, %v709
        %v718 = vadd.f32 %v682, %v709
        %v719 = vadd.f32 %v683, %v709
        %v720 = vadd.f32 %v684, %v709
        %v721 = vadd.f32 %v685, %v709
        %v722 = vadd.f32 %v686, %v709
        %v723 = vadd.f32 %v687, %v709
        %v724 = vadd.f32 %v688, %v709
        %v725 = vadd.f32 %v689, %v709
        %v726 = vadd.f32 %v690, %v709
        %v727 = vadd.f32 %v691, %v709
        %v728 = vadd.f32 %v692, %v709
        %v729 = vadd.f32 %v693, %v709
        %v730 = vadd.f32 %v694, %v709
        %v731 = vadd.f32 %v695, %v709
        %v732 = vadd.f32 %v696, %v709
        %v733 = vadd.f32 %v697, %v709
        %v734 = vadd.f32 %v698, %v709
        %v735 = vadd.f32 %v699, %v709
        %v736 = vadd.f32 %v700, %v709
        %v737 = vadd.f32 %v701, %v709
        %v738 = vadd.f32 %v702, %v709
        %v739 = vadd.f32 %v703, %v709
        %v740 = vadd.f32 %v704, %v709
        %v741 = vadd.f32 %v705, %v709
        %v742 = vadd.f32 %v706, %v709
        %vm743 = vcmp.ge.f32.partialorder %v711, 0.0
        %vm744 = vcmp.ge.f32.partialorder %v712, 0.0
        %vm745 = vcmp.ge.f32.partialorder %v713, 0.0
        %vm746 = vcmp.ge.f32.partialorder %v714, 0.0
        %vm747 = vcmp.ge.f32.partialorder %v715, 0.0
        %vm748 = vcmp.ge.f32.partialorder %v716, 0.0
        %vm749 = vcmp.ge.f32.partialorder %v717, 0.0
        %vm750 = vcmp.ge.f32.partialorder %v718, 0.0
        %vm751 = vcmp.ge.f32.partialorder %v719, 0.0
        %vm752 = vcmp.ge.f32.partialorder %v720, 0.0
        %vm753 = vcmp.ge.f32.partialorder %v721, 0.0
        %vm754 = vcmp.ge.f32.partialorder %v722, 0.0
        %vm755 = vcmp.ge.f32.partialorder %v723, 0.0
        %vm756 = vcmp.ge.f32.partialorder %v724, 0.0
        %vm757 = vcmp.ge.f32.partialorder %v725, 0.0
        %vm758 = vcmp.ge.f32.partialorder %v726, 0.0
        %vm759 = vcmp.ge.f32.partialorder %v727, 0.0
        %vm760 = vcmp.ge.f32.partialorder %v728, 0.0
        %vm761 = vcmp.ge.f32.partialorder %v729, 0.0
        %vm762 = vcmp.ge.f32.partialorder %v730, 0.0
        %vm763 = vcmp.ge.f32.partialorder %v731, 0.0
        %vm764 = vcmp.ge.f32.partialorder %v732, 0.0
        %vm765 = vcmp.ge.f32.partialorder %v733, 0.0
        %vm766 = vcmp.ge.f32.partialorder %v734, 0.0
        %vm767 = vcmp.ge.f32.partialorder %v735, 0.0
        %vm768 = vcmp.ge.f32.partialorder %v736, 0.0
        %vm769 = vcmp.ge.f32.partialorder %v737, 0.0
        %vm770 = vcmp.ge.f32.partialorder %v738, 0.0
        %vm771 = vcmp.ge.f32.partialorder %v739, 0.0
        %vm772 = vcmp.ge.f32.partialorder %v740, 0.0
        %vm773 = vcmp.ge.f32.partialorder %v741, 0.0
        %vm774 = vcmp.ge.f32.partialorder %v742, 0.0
        %v775 = vmul.f32 %v711, 0.2
        %v776 = vmul.f32 %v712, 0.2
        %v777 = vmul.f32 %v713, 0.2
        %v778 = vmul.f32 %v714, 0.2
        %v779 = vmul.f32 %v715, 0.2
        %v780 = vmul.f32 %v716, 0.2
        %v781 = vmul.f32 %v717, 0.2
        %v782 = vmul.f32 %v718, 0.2
        %v783 = vmul.f32 %v719, 0.2
        %v784 = vmul.f32 %v720, 0.2
        %v785 = vmul.f32 %v721, 0.2
        %v786 = vmul.f32 %v722, 0.2
        %v787 = vmul.f32 %v723, 0.2
        %v788 = vmul.f32 %v724, 0.2
        %v789 = vmul.f32 %v725, 0.2
        %v790 = vmul.f32 %v726, 0.2
        %v791 = vmul.f32 %v727, 0.2
        %v792 = vmul.f32 %v728, 0.2
        %v793 = vmul.f32 %v729, 0.2
        %v794 = vmul.f32 %v730, 0.2
        %v795 = vmul.f32 %v731, 0.2
        %v796 = vmul.f32 %v732, 0.2
        %v797 = vmul.f32 %v733, 0.2
        %v798 = vmul.f32 %v734, 0.2
        %v799 = vmul.f32 %v735, 0.2
        %v800 = vmul.f32 %v736, 0.2
        %v801 = vmul.f32 %v737, 0.2
        %v802 = vmul.f32 %v738, 0.2
        %v803 = vmul.f32 %v739, 0.2
        %v804 = vmul.f32 %v740, 0.2
        %v805 = vmul.f32 %v741, 0.2
        %v806 = vmul.f32 %v742, 0.2
        %v807 = vsel %vm743, %v711, %v775
        %v808 = vsel %vm744, %v712, %v776
        %v809 = vsel %vm745, %v713, %v777
        %v810 = vsel %vm746, %v714, %v778
        %v811 = vsel %vm747, %v715, %v779
        %v812 = vsel %vm748, %v716, %v780
        %v813 = vsel %vm749, %v717, %v781
        %v814 = vsel %vm750, %v718, %v782
        %v815 = vsel %vm751, %v719, %v783
        %v816 = vsel %vm752, %v720, %v784
        %v817 = vsel %vm753, %v721, %v785
        %v818 = vsel %vm754, %v722, %v786
        %v819 = vsel %vm755, %v723, %v787
        %v820 = vsel %vm756, %v724, %v788
        %v821 = vsel %vm757, %v725, %v789
        %v822 = vsel %vm758, %v726, %v790
        %v823 = vsel %vm759, %v727, %v791
        %v824 = vsel %vm760, %v728, %v792
        %v825 = vsel %vm761, %v729, %v793
        %v826 = vsel %vm762, %v730, %v794
        %v827 = vsel %vm763, %v731, %v795
        %v828 = vsel %vm764, %v732, %v796
        %v829 = vsel %vm765, %v733, %v797
        %v830 = vsel %vm766, %v734, %v798
        %v831 = vsel %vm767, %v735, %v799
        %v832 = vsel %vm768, %v736, %v800
        %v833 = vsel %vm769, %v737, %v801
        %v834 = vsel %vm770, %v738, %v802
        %v835 = vsel %vm771, %v739, %v803
        %v836 = vsel %vm772, %v740, %v804
        %v837 = vsel %vm773, %v741, %v805
        %v838 = vsel %vm774, %v742, %v806
        %v839 = vpack.c.bf16 %v807, %v807
        %v840 = vpack.c.bf16 %v808, %v808
        %v841 = vpack.c.bf16 %v809, %v809
        %v842 = vpack.c.bf16 %v810, %v810
        %v843 = vpack.c.bf16 %v811, %v811
        %v844 = vpack.c.bf16 %v812, %v812
        %v845 = vpack.c.bf16 %v813, %v813
        %v846 = vpack.c.bf16 %v814, %v814
        %v847 = vpack.c.bf16 %v815, %v815
        %v848 = vpack.c.bf16 %v816, %v816
        %v849 = vpack.c.bf16 %v817, %v817
        %v850 = vpack.c.bf16 %v818, %v818
        %v851 = vpack.c.bf16 %v819, %v819
        %v852 = vpack.c.bf16 %v820, %v820
        %v853 = vpack.c.bf16 %v821, %v821
        %v854 = vpack.c.bf16 %v822, %v822
        %v855 = vpack.c.bf16 %v823, %v823
        %v856 = vpack.c.bf16 %v824, %v824
        %v857 = vpack.c.bf16 %v825, %v825
        %v858 = vpack.c.bf16 %v826, %v826
        %v859 = vpack.c.bf16 %v827, %v827
        %v860 = vpack.c.bf16 %v828, %v828
        %v861 = vpack.c.bf16 %v829, %v829
        %v862 = vpack.c.bf16 %v830, %v830
        %v863 = vpack.c.bf16 %v831, %v831
        %v864 = vpack.c.bf16 %v832, %v832
        %v865 = vpack.c.bf16 %v833, %v833
        %v866 = vpack.c.bf16 %v834, %v834
        %v867 = vpack.c.bf16 %v835, %v835
        %v868 = vpack.c.bf16 %v836, %v836
        %v869 = vpack.c.bf16 %v837, %v837
        %v870 = vpack.c.bf16 %v838, %v838
        %871 = vst [vmem:[%s257] sm:$0xf] %v839
        %872 = vst [vmem:[%s257 + $0x4] sm:$0xf] %v840
        %873 = vst [vmem:[%s257 + $0x8] sm:$0xf] %v841
        %874 = vst [vmem:[%s257 + $0xc] sm:$0xf] %v842
        %875 = vst [vmem:[%s257 + $0x10] sm:$0xf] %v843
        %876 = vst [vmem:[%s257 + $0x14] sm:$0xf] %v844
        %877 = vst [vmem:[%s257 + $0x18] sm:$0xf] %v845
        %878 = vst [vmem:[%s257 + $0x1c] sm:$0xf] %v846
        %879 = vst [vmem:[%s257 + $0x20] sm:$0xf] %v847
        %880 = vst [vmem:[%s257 + $0x24] sm:$0xf] %v848
        %881 = vst [vmem:[%s257 + $0x28] sm:$0xf] %v849
        %882 = vst [vmem:[%s257 + $0x2c] sm:$0xf] %v850
        %883 = vst [vmem:[%s257 + $0x30] sm:$0xf] %v851
        %884 = vst [vmem:[%s257 + $0x34] sm:$0xf] %v852
        %885 = vst [vmem:[%s257 + $0x38] sm:$0xf] %v853
        %886 = vst [vmem:[%s257 + $0x3c] sm:$0xf] %v854
        %887 = vst [vmem:[%s257 + $0x40] sm:$0xf] %v855
        %888 = vst [vmem:[%s257 + $0x44] sm:$0xf] %v856
        %889 = vst [vmem:[%s257 + $0x48] sm:$0xf] %v857
        %890 = vst [vmem:[%s257 + $0x4c] sm:$0xf] %v858
        %891 = vst [vmem:[%s257 + $0x50] sm:$0xf] %v859
        %892 = vst [vmem:[%s257 + $0x54] sm:$0xf] %v860
        %893 = vst [vmem:[%s257 + $0x58] sm:$0xf] %v861
        %894 = vst [vmem:[%s257 + $0x5c] sm:$0xf] %v862
        %895 = vst [vmem:[%s257 + $0x60] sm:$0xf] %v863
        %896 = vst [vmem:[%s257 + $0x64] sm:$0xf] %v864
        %897 = vst [vmem:[%s257 + $0x68] sm:$0xf] %v865
        %898 = vst [vmem:[%s257 + $0x6c] sm:$0xf] %v866
        %899 = vst [vmem:[%s257 + $0x70] sm:$0xf] %v867
        %900 = vst [vmem:[%s257 + $0x74] sm:$0xf] %v868
        %901 = vst [vmem:[%s257 + $0x78] sm:$0xf] %v869
        %902 = vst [vmem:[%s257 + $0x7c] sm:$0xf] %v870
      $region40: #{conv_block_apply.1} parent=31 // pred_fallthru
        _
      %s903 = smul.u32 32, %s19
      %p904 = scmp.lt.s32.totalorder %s903, 63
      %s905 = scalar_select %p904, %s903, 63
      %p906 = scmp.lt.s32.totalorder %s20, 0
      %s907 = scalar_select %p906, %s20, 0
      %s908 = sadd.s32 %s907, %s905
      %s909 = smul.addr %s908, 4
      %s910 = scalar_lea.vmem %s3, %s909
      // Predicated region
      $region41: #{conv_block_apply.1} parent=31 // pred_check
        %p911 = pneg %p135
      $region42: #{conv_block_apply.1} parent=31 // pred_check_branch
        %913 = sbr.rel (%p911) target = $region44
      $region43: #{conv_block_apply.1} parent=31 // pred_region
        %s914 = smul.u32 32, %s19
      $region44: #{conv_block_apply.1} parent=31 // pred_fallthru
        _
    $region32: #{conv_block_apply.1} parent=5 // pred_fallthru
      _
    %p915 = scmp.le.s32.totalorder 2, %s9
    // Predicated region
    $region45: #{conv_block_apply.1} parent=5 // pred_check
      %p916 = pneg %p915
    $region46: #{conv_block_apply.1} parent=5 // pred_check_branch
      %918 = sbr.rel (%p916) target = $region48
    $region47: #{conv_block_apply.1} parent=5 // pred_region
      %s919 = ssub.s32 %s9, 2
      // Predicated region
      $region49: #{conv_block_apply.1} parent=47 // pred_check
        %p920 = pneg %p141
      $region50: #{conv_block_apply.1} parent=47 // pred_check_branch
        %922 = sbr.rel (%p920) target = $region52
      $region51: #{conv_block_apply.1} parent=47 // pred_region
        %s923 = smul.u32 32, %s22
        %p924 = scmp.lt.s32.totalorder %s923, 63
        %s925 = scalar_select %p924, %s923, 63
        %p926 = scmp.lt.s32.totalorder %s23, 0
        %s927 = scalar_select %p926, %s23, 0
        %s928 = sadd.s32 %s927, %s925
        %s929 = smul.addr %s928, 4
        %s930 = scalar_lea.vmem %s3, %s929
      $region52: #{conv_block_apply.1} parent=47 // pred_fallthru
        _
    $region48: #{conv_block_apply.1} parent=5 // pred_fallthru
      _
  $region6: #{conv_block_apply.1} parent=0 // loop_footer
    %s13 = sadd.s32 1, %s9
  $region7: #{conv_block_apply.1} parent=0 // loop_footer_branch
    %8 = sbr.rel target = $region3
  $region8: #{conv_block_apply.1} parent=0 // loop_exit
    _

</llo_original>
